<compile_context>
chip_gen: v7x
topology: tpu7x:2x2x1
jax: 0.10.0
libtpu: 0.0.40
codegen_flags: <defaults>
</compile_context>

<pallas_src>
import functools

import jax
import jax.numpy as jnp
from jax.experimental import pallas as pl
from jax.experimental.pallas import tpu as pltpu


def _round_up(n: int, m: int) -> int:
    return ((n + m - 1) // m) * m


def _default_tm() -> int:
    """Pick the default M tile per TPU generation (1024 on v7x, else 512)."""
    try:
        kind = jax.devices()[0].device_kind.lower()
    except Exception:
        return 512
    return 1024 if ("v7" in kind or "tpu7" in kind) else 512


def img_embedder_kernel(x_ref, w_ref, b_ref, o_ref):
    # x_ref: (tm, K) x.dtype | w_ref: (K, out) compute dtype | b_ref: (1, out) f32
    # o_ref: (tm, out) out_dtype
    x = x_ref[...].astype(w_ref.dtype)          # in-kernel cast: saves a wrapper HBM pass
    acc = jnp.dot(x, w_ref[...], preferred_element_type=jnp.float32)
    o_ref[...] = (acc + b_ref[...]).astype(o_ref.dtype)


def prepare_img_embedder_params(w_orig, w_extra, bias, compute_dtype=jnp.bfloat16):
    """One-time weight prep (outside the hot path).

    w_orig : (out, in_orig)   -- orig_layer.weight
    w_extra: (out, in_extra)  -- ImgEmbedder.weight
    bias   : (out,)           -- orig_layer.bias

    compute_dtype is an explicit product decision: torch runs the matmul in
    self.weight.dtype; pass jnp.float32 here to match an f32 torch module
    bit-for-bit, or keep the bf16 default for the native MXU path.

    Returns (wt, b2): wt = concat(W, dim=1).T in compute_dtype, b2 = (1, out) f32 bias.
    """
    w_cat = jnp.concatenate([w_orig, w_extra], axis=1)          # (out, K)
    wt = jnp.transpose(w_cat).astype(compute_dtype)             # (K, out)
    b2 = bias.reshape(1, -1).astype(jnp.float32)                # (1, out)
    return wt, b2


@functools.partial(jax.jit, static_argnames=("tm", "out_dtype"))
def _img_embedder_forward_impl(x, wt, b2, *, tm, out_dtype):
    B, S, K = x.shape
    out = wt.shape[1]
    assert wt.shape[0] == K
    if out_dtype is None:
        out_dtype = x.dtype

    M = B * S
    xm = x.reshape(M, K)     # contiguous reshape: free, no cast / pad in the wrapper

    # M tile: big enough to amortize per-step overhead, but
    #  (a) capped so the grid has >= 2 "parallel" steps when M allows (v7x megacore),
    #  (b) capped at round_up(M, 8) so tiny inputs use a tiny (still 8-aligned) tile.
    tm_eff = min(tm, _round_up((M + 1) // 2, 256), _round_up(M, 8))
    grid = (pl.cdiv(M, tm_eff),)

    bpe_x = jnp.dtype(x.dtype).itemsize
    bpe_w = jnp.dtype(wt.dtype).itemsize
    bpe_o = jnp.dtype(out_dtype).itemsize

    # Scoped-VMEM budget from the actual dtypes/tiles (+25% and 1 MiB headroom
    # for internal scratch); v5e's default is only 16 MiB, so set it explicitly.
    vmem_bytes = (
        2 * tm_eff * K * bpe_x          # x tile, double buffered
        + 2 * K * out * bpe_w           # weight (constant index_map; budget 2 bufs)
        + 2 * out * 4                   # bias
        + 2 * tm_eff * out * bpe_o      # output tile, double buffered
        + tm_eff * out * 4              # f32 matmul accumulator
    )
    vmem_limit = min(int(vmem_bytes * 1.25) + (1 << 20), 64 << 20)

    cost = pl.CostEstimate(
        flops=2 * M * K * out,
        transcendentals=0,
        bytes_accessed=M * K * bpe_x + K * out * bpe_w + out * 4 + M * out * bpe_o,
    )

    y = pl.pallas_call(
        img_embedder_kernel,
        out_shape=jax.ShapeDtypeStruct((M, out), out_dtype),
        grid_spec=pltpu.PrefetchScalarGridSpec(
            num_scalar_prefetch=0,
            grid=grid,
            in_specs=[
                pl.BlockSpec((tm_eff, K), lambda i: (i, 0)),   # x tile (tail block masked)
                pl.BlockSpec((K, out), lambda i: (0, 0)),      # weight, VMEM-resident
                pl.BlockSpec((1, out), lambda i: (0, 0)),      # bias,   VMEM-resident
            ],
            out_specs=pl.BlockSpec((tm_eff, out), lambda i: (i, 0)),
        ),
        compiler_params=pltpu.CompilerParams(
            # 1-D M axis parallel => shards across v7x's 2 TensorCores; neutral
            # on v5e/v6e.
            dimension_semantics=("parallel",),
            vmem_limit_bytes=vmem_limit,
        ),
        cost_estimate=cost,
    )(xm, wt, b2)

    return y.reshape(B, S, out)


def img_embedder_forward(x, wt, b2, *, tm=None, out_dtype=None):
    """
    x  : (batch, seq, in_orig + in_extra), any float dtype (cast in-kernel)
    wt : (K, out)   prepared concatenated+transposed weight (compute dtype)
    b2 : (1, out)   bias (f32)
    out_dtype: output dtype; None => x.dtype (matches the torch module)
    returns: (batch, seq, out)
    """
    if tm is None:
        tm = _default_tm()
    return _img_embedder_forward_impl(x, wt, b2, tm=tm, out_dtype=out_dtype)


if __name__ == "__main__":
    # Small, forward-consistent shapes:
    #   orig_layer: Linear(in_orig=32, out=128); extra control channels = 32
    #   => concatenated in_channels K = 64, out_channels = 128
    batch, seq = 2, 8
    in_orig, in_extra, out_ch = 32, 32, 128

    key = jax.random.PRNGKey(0)
    k_x, k_wo, k_we, k_b = jax.random.split(key, 4)

    x = jax.random.normal(k_x, (batch, seq, in_orig + in_extra), dtype=jnp.float32)
    w_orig = jax.random.normal(k_wo, (out_ch, in_orig), dtype=jnp.float32) * 0.02
    # module __init__: init = randn(out, in) * 0.01
    w_extra = jax.random.normal(k_we, (out_ch, in_extra), dtype=jnp.float32) * 0.01
    bias = jax.random.normal(k_b, (out_ch,), dtype=jnp.float32) * 0.1

    # Hot-path call: weights prepared once; x streamed in native dtype, cast
    # in-kernel; output written once at (M, out) in x.dtype.
    wt, b2 = prepare_img_embedder_params(w_orig, w_extra, bias)
    y = img_embedder_forward(x, wt, b2)
    y = jax.block_until_ready(y)
    assert y.shape == (batch, seq, out_ch)
    assert y.dtype == x.dtype

    # Reference 1: same bf16-input / f32-accumulate semantics (tight check).
    xb = x.reshape(-1, in_orig + in_extra).astype(jnp.bfloat16).astype(jnp.float32)
    wtf = wt.astype(jnp.float32)
    y_ref_bf16 = (xb @ wtf + bias).reshape(batch, seq, out_ch).astype(x.dtype)
    assert jnp.allclose(y, y_ref_bf16, atol=2e-3, rtol=2e-3)

    # Reference 2: full-f32 torch semantics (loose check — bf16 compute dtype is
    # a deliberate deviation; pass compute_dtype=jnp.float32 to match exactly).
    w_cat = jnp.concatenate([w_orig, w_extra], axis=1)
    y_ref_f32 = jnp.einsum("bsk,ok->bso", x, w_cat) + bias
    assert jnp.allclose(y, y_ref_f32, atol=3e-2, rtol=3e-2)

    print("KERNEL_OK")
</pallas_src>

<mosaic_0001>
module attributes {stable_mosaic.version = 11 : i64} {
  func.func @img_embedder_kernel(%arg0: i32, %arg1: memref<16x64xf32, #tpu.memory_space<vmem>>, %arg2: memref<64x128xbf16, #tpu.memory_space<vmem>>, %arg3: memref<1x128xf32, #tpu.memory_space<vmem>>, %arg4: memref<16x128xf32, #tpu.memory_space<vmem>>) attributes {dimension_semantics = [#tpu.dimension_semantics<parallel>], iteration_bounds = array<i64: 1>, scalar_prefetch = 0 : i64, scratch_operands = 0 : i64, tpu.core_type = #tpu.core_type<tc>, window_params = [{transform_indices = @transform_0, window_bounds = array<i64: 16, 64>}, {pipeline_mode = #tpu.pipeline_mode<synchronous>, transform_indices = @transform_1, window_bounds = array<i64: 64, 128>}, {pipeline_mode = #tpu.pipeline_mode<synchronous>, transform_indices = @transform_2, window_bounds = array<i64: 1, 128>}, {transform_indices = @transform_3, window_bounds = array<i64: 16, 128>}]} {
    %c0 = arith.constant 0 : index
    %c0_0 = arith.constant 0 : index
    %0 = vector.load %arg1[%c0, %c0_0] : memref<16x64xf32, #tpu.memory_space<vmem>>, vector<16x64xf32>
    %1 = arith.truncf %0 : vector<16x64xf32> to vector<16x64xbf16>
    %c0_1 = arith.constant 0 : index
    %c0_2 = arith.constant 0 : index
    %2 = vector.load %arg2[%c0_1, %c0_2] : memref<64x128xbf16, #tpu.memory_space<vmem>>, vector<64x128xbf16>
    %cst = arith.constant dense<0.000000e+00> : vector<16x128xf32>
    %3 = tpu.matmul %1, %2, %cst {dimension_numbers = #tpu.dot_dimension_numbers<[1], [0], [0], [1], [0, 0, 1, 1], [], []>} : vector<16x64xbf16>, vector<64x128xbf16>, vector<16x128xf32> -> vector<16x128xf32>
    %c0_3 = arith.constant 0 : index
    %c0_4 = arith.constant 0 : index
    %4 = vector.load %arg3[%c0_3, %c0_4] : memref<1x128xf32, #tpu.memory_space<vmem>>, vector<1x128xf32>
    %5 = vector.broadcast %4 : vector<1x128xf32> to vector<16x128xf32>
    %6 = arith.addf %3, %5 : vector<16x128xf32>
    %c0_5 = arith.constant 0 : index
    %c0_6 = arith.constant 0 : index
    %7 = vector.load %arg4[%c0_5, %c0_6] : memref<16x128xf32, #tpu.memory_space<vmem>>, vector<16x128xf32>
    tpu.vector_store %arg4[%c0_5, %c0_6], %6 {strides = array<i32>} : memref<16x128xf32, #tpu.memory_space<vmem>>, vector<16x128xf32>,
    return
  }
  func.func @transform_0(%arg0: i32) -> (i32, i32) {
    %c0_i32 = arith.constant 0 : i32
    %c0_i32_0 = arith.constant 0 : i32
    return %arg0, %c0_i32 : i32, i32
  }
  func.func @transform_1(%arg0: i32) -> (i32, i32) {
    %c0_i32 = arith.constant 0 : i32
    %c0_i32_0 = arith.constant 0 : i32
    %c0_i32_1 = arith.constant 0 : i32
    return %c0_i32, %c0_i32_0 : i32, i32
  }
  func.func @transform_2(%arg0: i32) -> (i32, i32) {
    %c0_i32 = arith.constant 0 : i32
    %c0_i32_0 = arith.constant 0 : i32
    %c0_i32_1 = arith.constant 0 : i32
    return %c0_i32, %c0_i32_0 : i32, i32
  }
  func.func @transform_3(%arg0: i32) -> (i32, i32) {
    %c0_i32 = arith.constant 0 : i32
    %c0_i32_0 = arith.constant 0 : i32
    return %arg0, %c0_i32 : i32, i32
  }
}

</mosaic_0001>

<llo_original>
// kernel: _img_embedder_forward_impl.1
$region0: #{_img_embedder_forward_impl.1}
  #allocation0 [shape = 'u32[]', space=smem, size = 0x4, offset = 0x4, fixed_abs, tag = 'smem constant byte address 0x4 - core index']
  #allocation1 [shape = 'u32[144,128]{1,0:T(1,128)}', space=vmem, size = 0x12000, scoped, tag = 'internal scratch']
  %s0 = inlined_call_operand.hbm [shape: f32[16,64], index: 0, kind: input, shape index: {}]
  %s1 = inlined_call_operand.hbm [shape: bf16[64,128], index: 1, kind: input, shape index: {}]
  %s2 = inlined_call_operand.vmem [shape: f32[1,128], index: 2, kind: input, shape index: {}]
  %s3 = inlined_call_operand.hbm [shape: f32[16,128], index: 3, kind: output, shape index: {}]
  %s4 = sld [smem:[#allocation0]]
  $region30: #{_img_embedder_forward_impl.1} parent=0
    _
  %s6 = ssub.s32 1, %s4
  %s7 = scalar_select 0, %s6, %s4
  $region1: #{_img_embedder_forward_impl.1} parent=0
    #allocation2 [shape = 'u8[8192]{0}', space=vmem, size = 0x2000, scoped, tag = 'input window, operand 0, single buffered']
    #allocation3 [shape = 's32[1]{0}', space=sflag, size = 0x4, scoped, tag = 'scoped memory for _img_embedder_forward_impl.1']
    #allocation4 [shape = 's32[1]{0}', space=sflag, size = 0x4, scoped, tag = 'scoped memory for _img_embedder_forward_impl.1']
    #allocation5 [shape = 'u8[16384]{0}', space=vmem, size = 0x4000, scoped, tag = 'input window, operand 1, single buffered']
    #allocation6 [shape = 's32[1]{0}', space=sflag, size = 0x4, scoped, tag = 'scoped memory for _img_embedder_forward_impl.1']
    #allocation7 [shape = 'u8[8192]{0}', space=vmem, size = 0x2000, scoped, tag = 'output window, operand 0, single buffered']
    %8 = vsyncpa [#allocation3], 0
    %9 = vsyncpa [#allocation6], 0
    %10 = vsyncpa [#allocation4], 0
    // Predicated region
    $region2: #{_img_embedder_forward_impl.1} parent=1 // pred_check
      _
    $region3: #{_img_embedder_forward_impl.1} parent=1 // pred_check_branch
      %12 = sbr.rel (0) target = $region5
    $region4: #{_img_embedder_forward_impl.1} parent=1 // pred_region
      %s14 = ssub.s32 256, 256
      %15 = vsyncadd [#allocation3], %s14
      %s16 = sshll.u32 [#allocation2], 4
      %s17 = int_to_ptr.vmem [resolvable:$true] %s16
      %22 = dma.hbm_to_vmem [thread:$0]  %s0, 256, %s17, [#allocation3], 128, 128, 8
    $region5: #{_img_embedder_forward_impl.1} parent=1 // pred_fallthru
      _
    // Predicated region
    $region6: #{_img_embedder_forward_impl.1} parent=1 // pred_check
      _
    $region7: #{_img_embedder_forward_impl.1} parent=1 // pred_check_branch
      %24 = sbr.rel (0) target = $region9
    $region8: #{_img_embedder_forward_impl.1} parent=1 // pred_region
      %s26 = ssub.s32 512, 512
      %27 = vsyncadd [#allocation6], %s26
      %s28 = sshll.u32 [#allocation5], 4
      %s29 = int_to_ptr.vmem [resolvable:$true] %s28
      %34 = dma.hbm_to_vmem [thread:$0]  %s1, 512, %s29, [#allocation6], 64, 64, 4
    $region9: #{_img_embedder_forward_impl.1} parent=1 // pred_fallthru
      _
    // Predicated region
    $region10: #{_img_embedder_forward_impl.1} parent=1 // pred_check
      _
    $region11: #{_img_embedder_forward_impl.1} parent=1 // pred_check_branch
      %36 = sbr.rel (0) target = $region13
    $region12: #{_img_embedder_forward_impl.1} parent=1 // pred_region
      _
    $region13: #{_img_embedder_forward_impl.1} parent=1 // pred_fallthru
      _
    // Predicated region
    $region14: #{_img_embedder_forward_impl.1} parent=1 // pred_check
      _
    $region15: #{_img_embedder_forward_impl.1} parent=1 // pred_check_branch
      %38 = sbr.rel (0) target = $region17
    $region16: #{_img_embedder_forward_impl.1} parent=1 // pred_region
      %39 = dma.done [#allocation3], 256
    $region17: #{_img_embedder_forward_impl.1} parent=1 // pred_fallthru
      _
    // Predicated region
    $region18: #{_img_embedder_forward_impl.1} parent=1 // pred_check
      _
    $region19: #{_img_embedder_forward_impl.1} parent=1 // pred_check_branch
      %41 = sbr.rel (0) target = $region21
    $region20: #{_img_embedder_forward_impl.1} parent=1 // pred_region
      %42 = dma.done [#allocation6], 512
    $region21: #{_img_embedder_forward_impl.1} parent=1 // pred_fallthru
      _
    %v44 = vld [vmem:[#allocation2] sm:$0xff]
    %v45 = vld [vmem:[#allocation2 + $0x8] sm:$0xff]
    %v46 = vpack.c.bf16 %v45, %v44
    %v47 = vld [vmem:[#allocation5] sm:$0xf]
    %v48 = vld [vmem:[#allocation5 + $0x4] sm:$0xf]
    %v49 = vld [vmem:[#allocation5 + $0x8] sm:$0xf]
    %v50 = vld [vmem:[#allocation5 + $0xc] sm:$0xf]
    %v51 = vld [vmem:[#allocation5 + $0x10] sm:$0xf]
    %v52 = vld [vmem:[#allocation5 + $0x14] sm:$0xf]
    %v53 = vld [vmem:[#allocation5 + $0x18] sm:$0xf]
    %v54 = vld [vmem:[#allocation5 + $0x1c] sm:$0xf]
    %v55 = vld [vmem:[%s2] sm:$0x1]
    %v57 = vlaneseq
    %v58 = vshrl.u32 %v57, 7
    %v59 = vsub.s32 0, %v58
    %v60 = vrot.slane %v55, %v59
    %v70 = vunpack.c.l.b16 %v47
    %v71 = vunpack.c.l.b16 %v48
    %v72 = vunpack.c.l.b16 %v49
    %v73 = vunpack.c.l.b16 %v50
    %v74 = vunpack.c.l.b16 %v51
    %v75 = vunpack.c.l.b16 %v52
    %v76 = vunpack.c.l.b16 %v53
    %v77 = vunpack.c.l.b16 %v54
    %v78 = vpack.c.b16 %v71, %v70
    %v79 = vpack.c.b16 %v73, %v72
    %v80 = vpack.c.b16 %v75, %v74
    %v81 = vpack.c.b16 %v77, %v76
    %vm86 = vcmask 523264
    %v88 = vsel %vm86, %v46, 0
    %90 = vmatprep.subr.bf16.mxu0 0
    %91 = vmatpush1.bf16.msra.mxu0 %v78
    %92 = vmatprep.subr.bf16.mxu0 0
    %93 = vmatpush1.bf16.msra.mxu0 %v79
    %94 = vmatprep.subr.bf16.mxu0 0
    %95 = vmatpush1.bf16.msra.mxu0 %v80
    %96 = vmatprep.subr.bf16.mxu0 0
    %97 = vmatpush1.bf16.msra.mxu0 %v81
    %98 = vmatprep.subr.bf16.mxu0 0
    %99 = vmatpush1.bf16.msra.mxu0 0
    %100 = vmatprep.subr.bf16.mxu0 0
    %101 = vmatpush1.bf16.msra.mxu0 0
    %102 = vmatprep.subr.bf16.mxu0 0
    %103 = vmatpush1.bf16.msra.mxu0 0
    %104 = vmatprep.subr.bf16.mxu0 0
    %105 = vmatpush1.bf16.msra.mxu0 0
    %106 = vmatprep.subr.bf16.mxu0 0
    %107 = vmatpush1.bf16.msra.mxu0 0
    %108 = vmatprep.subr.bf16.mxu0 0
    %109 = vmatpush1.bf16.msra.mxu0 0
    %110 = vmatprep.subr.bf16.mxu0 0
    %111 = vmatpush1.bf16.msra.mxu0 0
    %112 = vmatprep.subr.bf16.mxu0 0
    %113 = vmatpush1.bf16.msra.mxu0 0
    %114 = vmatprep.subr.bf16.mxu0 0
    %115 = vmatpush1.bf16.msra.mxu0 0
    %116 = vmatprep.subr.bf16.mxu0 0
    %117 = vmatpush1.bf16.msra.mxu0 0
    %118 = vmatprep.subr.bf16.mxu0 0
    %119 = vmatpush1.bf16.msra.mxu0 0
    %120 = vmatprep.subr.bf16.mxu0 0
    %121 = vmatpush1.bf16.msra.mxu0 0
    %122 = vmatprep.mubr.bf16.mxu0 0
    %123 = vmatmul.mubr.bf16.gmra.mrb[0].mxu0 %v88
    %v124 = vpop.f32.mrb[0].mxu0
    %v125 = vadd.f32 %v60, %v124
    %v126 = vpop.f32.mrb[0].mxu0
    %v127 = vpop.f32.mrb[0].mxu0
    %v128 = vadd.f32 %v60, %v127
    %v129 = vpop.f32.mrb[0].mxu0
    %130 = vdwg.mxu0
    %131 = vst [vmem:[#allocation7] sm:$0xff] %v125
    %132 = vst [vmem:[#allocation7 + $0x8] sm:$0xff] %v128
    // Predicated region
    $region22: #{_img_embedder_forward_impl.1} parent=1 // pred_check
      _
    $region23: #{_img_embedder_forward_impl.1} parent=1 // pred_check_branch
      %134 = sbr.rel (0) target = $region25
    $region24: #{_img_embedder_forward_impl.1} parent=1 // pred_region
      %s136 = ssub.s32 256, 256
      %137 = vsyncadd [#allocation4], %s136
      %s138 = sshll.u32 [#allocation7], 4
      %s139 = int_to_ptr.vmem [resolvable:$true] %s138
      %144 = dma.vmem_to_hbm [thread:$0]  %s139, 256, %s3, [#allocation4], 128, 128, 8
    $region25: #{_img_embedder_forward_impl.1} parent=1 // pred_fallthru
      _
    // Predicated region
    $region26: #{_img_embedder_forward_impl.1} parent=1 // pred_check
      _
    $region27: #{_img_embedder_forward_impl.1} parent=1 // pred_check_branch
      %146 = sbr.rel (0) target = $region29
    $region28: #{_img_embedder_forward_impl.1} parent=1 // pred_region
      %147 = dma.done [#allocation4], 256
    $region29: #{_img_embedder_forward_impl.1} parent=1 // pred_fallthru
      _
    %148 = vsyncpa [#allocation3], 1
    %149 = vsyncpa [#allocation6], 1
    %150 = vsyncpa [#allocation4], 1

</llo_original>
